<compile_context>
chip_gen: v5e
topology: v5e:2x2
jax: 0.10.0
libtpu: 0.0.40
codegen_flags: <defaults>
</compile_context>

<pallas_src>
import jax
import jax.numpy as jnp
import numpy as np
from jax import lax
from jax.experimental import pallas as pl
from jax.experimental.pallas import tpu as pltpu


def _round_up(n, m):
    return ((n + m - 1) // m) * m


def _vmem_capacity_bytes():
    try:
        return int(pltpu.get_tpu_info().vmem_capacity_bytes)
    except Exception:
        return 64 * 1024 * 1024  # conservative default (v7x per-TC VMEM)


def _resident_kernel(x_ref, y_ref, bias_ref, o_ref):
    # x_ref:    (1, TILE_L1, Hp)  f32  -- query tile (cast to bf16 in-kernel)
    # y_ref:    (1, L2p, Hp)      bf16 -- all keys for this batch element
    # bias_ref: (1, 1, L2p)       f32  -- 0 valid / -1e30 padding
    # o_ref:    (1, TILE_L1, Hp)  f32
    x = x_ref[0].astype(jnp.bfloat16)            # in-kernel cast: VPU filler
    y = y_ref[0]                                  # (L2p, Hp) bf16
    bias = bias_ref[0]                            # (1, L2p) f32

    # scores = x @ y^T: contract H of both operands (no transpose of y).
    scores = lax.dot_general(
        x, y,
        dimension_numbers=(((1,), (1,)), ((), ())),
        preferred_element_type=jnp.float32,
    ) + bias                                      # (TILE_L1, L2p) f32

    # Stable softmax numerator; normalize AFTER the second matmul so the
    # per-element divide is over Hp (small) rather than L2p (large).
    s_max = jnp.max(scores, axis=-1, keepdims=True)
    e = jnp.exp(scores - s_max)
    denom = jnp.sum(e, axis=-1, keepdims=True)

    out_unnorm = jnp.dot(e.astype(jnp.bfloat16), y,
                         preferred_element_type=jnp.float32)  # (TILE_L1, Hp)
    o_ref[0] = (out_unnorm * pl.reciprocal(denom, approx=True)
                ).astype(o_ref.dtype)


def _flash_kernel(x_ref, y_ref, bias_ref, o_ref, m_sc, l_sc, acc_sc):
    # Online-softmax path: grid = (B, L1 tiles, L2 tiles), L2 axis last and
    # "arbitrary"; running max / denom / unnormalized acc live in VMEM scratch.
    k = pl.program_id(2)

    @pl.when(k == 0)
    def _():
        m_sc[...] = jnp.full_like(m_sc, -jnp.inf)
        l_sc[...] = jnp.zeros_like(l_sc)
        acc_sc[...] = jnp.zeros_like(acc_sc)

    x = x_ref[0].astype(jnp.bfloat16)             # (TILE_L1, Hp)
    y = y_ref[0]                                  # (TILE_L2, Hp) bf16
    bias = bias_ref[0]                            # (1, TILE_L2) f32

    s = lax.dot_general(
        x, y,
        dimension_numbers=(((1,), (1,)), ((), ())),
        preferred_element_type=jnp.float32,
    ) + bias                                      # (TILE_L1, TILE_L2) f32

    m_new = jnp.maximum(m_sc[...], jnp.max(s, axis=-1, keepdims=True))
    scale = jnp.exp(m_sc[...] - m_new)
    p = jnp.exp(s - m_new)
    l_sc[...] = scale * l_sc[...] + jnp.sum(p, axis=-1, keepdims=True)
    acc_sc[...] = scale * acc_sc[...] + jnp.dot(
        p.astype(jnp.bfloat16), y, preferred_element_type=jnp.float32)
    m_sc[...] = m_new

    @pl.when(k == pl.num_programs(2) - 1)
    def _():
        o_ref[0] = (acc_sc[...] * pl.reciprocal(l_sc[...], approx=True)
                    ).astype(o_ref.dtype)


def seq_attn_match(x, y, y_mask, *, tile_l1=256, tile_l2=None):
    """x: (B, L1, H) f32, y: (B, L2, H) f32, y_mask: (B, L2) bool (True=pad).

    tile_l2=None  -> auto (resident keys if they fit the VMEM budget,
                     otherwise L2-tiled online softmax).
    tile_l2=int   -> force the L2-tiled online-softmax path with that tile.
    """
    B, L1, H = x.shape
    _, L2, _ = y.shape
    assert y.shape[0] == B and y_mask.shape == (B, L2)

    Hp = _round_up(H, 128)
    # Query tile: multiple of 16 (bf16 sublane packing), capped by padded L1.
    tile = _round_up(min(int(tile_l1), _round_up(L1, 16)), 16)
    L1p = _round_up(L1, tile)

    cap = _vmem_capacity_bytes()
    vmem_limit = (100 * 1024 * 1024 if cap >= 128 * 1024 * 1024
                  else 48 * 1024 * 1024)
    budget = int(vmem_limit * 0.75)

    use_flash = tile_l2 is not None
    if tile_l2 is None:
        L2p_probe = _round_up(L2, 128)
        resident_bytes = (
            2 * L2p_probe * Hp * 2          # y, bf16, double-buffered
            + 4 * tile * Hp * 4             # x + out tiles, f32, double-buffered
            + 2 * L2p_probe * 4             # bias
            + 3 * tile * L2p_probe * 4)     # f32 scores / exp temporaries
        if resident_bytes > budget:
            use_flash = True
            tile_l2 = 128
            for cand in (2048, 1024, 512, 256, 128):
                flash_bytes = (2 * cand * Hp * 2 + 4 * tile * Hp * 4
                               + tile * Hp * 4 + 2 * cand * 4
                               + 3 * tile * cand * 4)
                if flash_bytes <= budget:
                    tile_l2 = cand
                    break

    if use_flash:
        tile_l2 = _round_up(int(tile_l2), 128)
        L2p = _round_up(L2, tile_l2)
    else:
        L2p = _round_up(L2, 128)

    # Pad inputs. x stays f32 (cast to bf16 happens in-kernel); fast path
    # skips the pad entirely when L1/H are already aligned.
    if L1p == L1 and Hp == H:
        x_p = x
    else:
        x_p = jnp.pad(x, ((0, 0), (0, L1p - L1), (0, Hp - H)))
    y_p = jnp.pad(y, ((0, 0), (0, L2p - L2), (0, Hp - H))).astype(jnp.bfloat16)
    mask_p = y_mask if L2p == L2 else jnp.pad(
        y_mask, ((0, 0), (0, L2p - L2)), constant_values=True)
    bias = jnp.where(mask_p, jnp.float32(-1e30),
                     jnp.float32(0.0)).reshape(B, 1, L2p)

    out_shape = jax.ShapeDtypeStruct((B, L1p, Hp), x.dtype)

    if not use_flash:
        out = pl.pallas_call(
            _resident_kernel,
            out_shape=out_shape,
            grid=(B, L1p // tile),
            in_specs=[
                # x: stream query tiles along the L1 grid axis (f32).
                pl.BlockSpec((1, tile, Hp), lambda b, i: (b, i, 0)),
                # y / bias: constant along L1 -> VMEM-resident per batch.
                pl.BlockSpec((1, L2p, Hp), lambda b, i: (b, 0, 0)),
                pl.BlockSpec((1, 1, L2p), lambda b, i: (b, 0, 0)),
            ],
            out_specs=pl.BlockSpec((1, tile, Hp), lambda b, i: (b, i, 0)),
            compiler_params=pltpu.CompilerParams(
                dimension_semantics=("parallel", "parallel"),
                vmem_limit_bytes=vmem_limit,
            ),
        )(x_p, y_p, bias)
    else:
        out = pl.pallas_call(
            _flash_kernel,
            out_shape=out_shape,
            grid=(B, L1p // tile, L2p // tile_l2),
            in_specs=[
                pl.BlockSpec((1, tile, Hp), lambda b, i, k: (b, i, 0)),
                pl.BlockSpec((1, tile_l2, Hp), lambda b, i, k: (b, k, 0)),
                pl.BlockSpec((1, 1, tile_l2), lambda b, i, k: (b, 0, k)),
            ],
            out_specs=pl.BlockSpec((1, tile, Hp), lambda b, i, k: (b, i, 0)),
            scratch_shapes=[
                pltpu.VMEM((tile, 1), jnp.float32),    # running max
                pltpu.VMEM((tile, 1), jnp.float32),    # running denom
                pltpu.VMEM((tile, Hp), jnp.float32),   # unnormalized acc
            ],
            compiler_params=pltpu.CompilerParams(
                dimension_semantics=("parallel", "parallel", "arbitrary"),
                vmem_limit_bytes=vmem_limit,
            ),
        )(x_p, y_p, bias)

    if L1p == L1 and Hp == H:
        return out
    return out[:, :L1, :H]


def _reference(x, y, y_mask):
    scores = jnp.einsum("bqh,bkh->bqk", x, y)
    scores = jnp.where(y_mask[:, None, :], -jnp.inf, scores)
    alpha = jax.nn.softmax(scores, axis=-1)
    return jnp.einsum("bqk,bkh->bqh", alpha, y)


if __name__ == "__main__":
    key = jax.random.PRNGKey(0)
    kx, ky, kx2, ky2 = jax.random.split(key, 4)

    # --- resident-keys path (small L2, keys fit VMEM) ---
    B, L1, L2, H = 2, 16, 8, 32
    x = jax.random.normal(kx, (B, L1, H), dtype=jnp.float32)
    y = jax.random.normal(ky, (B, L2, H), dtype=jnp.float32)
    lengths = jnp.array([L2, 5])
    y_mask = jnp.arange(L2)[None, :] >= lengths[:, None]       # (B, L2), True=pad

    out = seq_attn_match(x, y, y_mask)
    jax.block_until_ready(out)
    ref = _reference(x, y, y_mask)
    # bf16 MXU operands (f32 accumulate) vs the pure-f32 reference -> loose tol.
    np.testing.assert_allclose(np.asarray(out), np.asarray(ref),
                               rtol=5e-2, atol=5e-2)

    # --- L2-tiled online-softmax path (forced via tile_l2) ---
    B2, L1b, L2b, Hb = 2, 16, 300, 32
    x2 = 0.5 * jax.random.normal(kx2, (B2, L1b, Hb), dtype=jnp.float32)
    y2 = jax.random.normal(ky2, (B2, L2b, Hb), dtype=jnp.float32)
    lengths2 = jnp.array([L2b, 140])
    y_mask2 = jnp.arange(L2b)[None, :] >= lengths2[:, None]

    out2 = seq_attn_match(x2, y2, y_mask2, tile_l2=128)
    jax.block_until_ready(out2)
    ref2 = _reference(x2, y2, y_mask2)
    np.testing.assert_allclose(np.asarray(out2), np.asarray(ref2),
                               rtol=5e-2, atol=5e-2)

    print("KERNEL_OK")
</pallas_src>

<mosaic_0001>
module attributes {stable_mosaic.version = 11 : i64} {
  func.func @_resident_kernel(%arg0: i32, %arg1: i32, %arg2: memref<1x16x128xf32, #tpu.memory_space<vmem>>, %arg3: memref<1x128x128xbf16, #tpu.memory_space<vmem>>, %arg4: memref<1x1x128xf32, #tpu.memory_space<vmem>>, %arg5: memref<1x16x128xf32, #tpu.memory_space<vmem>>) attributes {dimension_semantics = [#tpu.dimension_semantics<parallel>, #tpu.dimension_semantics<parallel>], iteration_bounds = array<i64: 2, 1>, scalar_prefetch = 0 : i64, scratch_operands = 0 : i64, tpu.core_type = #tpu.core_type<tc>, window_params = [{transform_indices = @transform_0, window_bounds = array<i64: 1, 16, 128>}, {transform_indices = @transform_1, window_bounds = array<i64: 1, 128, 128>}, {transform_indices = @transform_2, window_bounds = array<i64: 1, 1, 128>}, {transform_indices = @transform_3, window_bounds = array<i64: 1, 16, 128>}]} {
    %c0 = arith.constant 0 : index
    %c0_0 = arith.constant 0 : index
    %c0_1 = arith.constant 0 : index
    %0 = vector.load %arg2[%c0, %c0_0, %c0_1] : memref<1x16x128xf32, #tpu.memory_space<vmem>>, vector<1x16x128xf32>
    %1 = vector.shape_cast %0 : vector<1x16x128xf32> to vector<16x128xf32>
    %2 = arith.truncf %1 : vector<16x128xf32> to vector<16x128xbf16>
    %c0_2 = arith.constant 0 : index
    %c0_3 = arith.constant 0 : index
    %c0_4 = arith.constant 0 : index
    %3 = vector.load %arg3[%c0_2, %c0_3, %c0_4] : memref<1x128x128xbf16, #tpu.memory_space<vmem>>, vector<1x128x128xbf16>
    %4 = vector.shape_cast %3 : vector<1x128x128xbf16> to vector<128x128xbf16>
    %c0_5 = arith.constant 0 : index
    %c0_6 = arith.constant 0 : index
    %c0_7 = arith.constant 0 : index
    %5 = vector.load %arg4[%c0_5, %c0_6, %c0_7] : memref<1x1x128xf32, #tpu.memory_space<vmem>>, vector<1x1x128xf32>
    %6 = vector.shape_cast %5 : vector<1x1x128xf32> to vector<1x128xf32>
    %cst = arith.constant dense<0.000000e+00> : vector<16x128xf32>
    %7 = tpu.matmul %2, %4, %cst {dimension_numbers = #tpu.dot_dimension_numbers<[1], [1], [0], [0], [0, 0, 1, 0], [], []>} : vector<16x128xbf16>, vector<128x128xbf16>, vector<16x128xf32> -> vector<16x128xf32>
    %8 = vector.broadcast %6 : vector<1x128xf32> to vector<16x128xf32>
    %9 = arith.addf %7, %8 : vector<16x128xf32>
    %cst_8 = arith.constant dense<0xFF800000> : vector<16xf32>
    %10 = vector.multi_reduction <maximumf>, %9, %cst_8 [1] : vector<16x128xf32> to vector<16xf32>
    %11 = vector.shape_cast %10 : vector<16xf32> to vector<16x1xf32>
    %12 = vector.broadcast %11 : vector<16x1xf32> to vector<16x128xf32>
    %13 = arith.subf %9, %12 : vector<16x128xf32>
    %14 = math.exp %13 : vector<16x128xf32>
    %cst_9 = arith.constant dense<0.000000e+00> : vector<16xf32>
    %15 = vector.multi_reduction <add>, %14, %cst_9 [1] : vector<16x128xf32> to vector<16xf32>
    %16 = vector.shape_cast %15 : vector<16xf32> to vector<16x1xf32>
    %17 = arith.truncf %14 : vector<16x128xf32> to vector<16x128xbf16>
    %cst_10 = arith.constant dense<0.000000e+00> : vector<16x128xf32>
    %18 = tpu.matmul %17, %4, %cst_10 {dimension_numbers = #tpu.dot_dimension_numbers<[1], [0], [0], [1], [0, 0, 1, 1], [], []>} : vector<16x128xbf16>, vector<128x128xbf16>, vector<16x128xf32> -> vector<16x128xf32>
    %19 = tpu.reciprocal %16 {approx = true} : vector<16x1xf32> -> vector<16x1xf32>
    %20 = vector.broadcast %19 : vector<16x1xf32> to vector<16x128xf32>
    %21 = arith.mulf %18, %20 : vector<16x128xf32>
    %c0_11 = arith.constant 0 : index
    %c0_12 = arith.constant 0 : index
    %c0_13 = arith.constant 0 : index
    %22 = vector.load %arg5[%c0_11, %c0_12, %c0_13] : memref<1x16x128xf32, #tpu.memory_space<vmem>>, vector<1x16x128xf32>
    %23 = vector.shape_cast %22 : vector<1x16x128xf32> to vector<16x128xf32>
    %24 = vector.shape_cast %21 : vector<16x128xf32> to vector<1x16x128xf32>
    tpu.vector_store %arg5[%c0_11, %c0_12, %c0_13], %24 {strides = array<i32>} : memref<1x16x128xf32, #tpu.memory_space<vmem>>, vector<1x16x128xf32>,
    return
  }
  func.func @transform_0(%arg0: i32, %arg1: i32) -> (i32, i32, i32) {
    %c0_i32 = arith.constant 0 : i32
    %c0_i32_0 = arith.constant 0 : i32
    return %arg0, %arg1, %c0_i32 : i32, i32, i32
  }
  func.func @transform_1(%arg0: i32, %arg1: i32) -> (i32, i32, i32) {
    %c0_i32 = arith.constant 0 : i32
    %c0_i32_0 = arith.constant 0 : i32
    %c0_i32_1 = arith.constant 0 : i32
    return %arg0, %c0_i32, %c0_i32_0 : i32, i32, i32
  }
  func.func @transform_2(%arg0: i32, %arg1: i32) -> (i32, i32, i32) {
    %c0_i32 = arith.constant 0 : i32
    %c0_i32_0 = arith.constant 0 : i32
    %c0_i32_1 = arith.constant 0 : i32
    return %arg0, %c0_i32, %c0_i32_0 : i32, i32, i32
  }
  func.func @transform_3(%arg0: i32, %arg1: i32) -> (i32, i32, i32) {
    %c0_i32 = arith.constant 0 : i32
    %c0_i32_0 = arith.constant 0 : i32
    return %arg0, %arg1, %c0_i32 : i32, i32, i32
  }
}

</mosaic_0001>

<llo_original>
// kernel: tpu_custom_call.1
$region0: #{tpu_custom_call.1}
  #allocation0 [shape = 'u32[]', space=smem, size = 0x4, offset = 0x4, fixed_abs, tag = 'smem constant byte address 0x4 - core index']
  #allocation1 [shape = 'u32[72,128]{1,0:T(1,128)}', space=vmem, size = 0x9000, scoped, tag = 'internal scratch']
  %s0 = inlined_call_operand.hbm [shape: f32[2,16,128], index: 0, kind: input, shape index: {}]
  %s1 = inlined_call_operand.hbm [shape: bf16[2,128,128], index: 1, kind: input, shape index: {}]
  %s2 = inlined_call_operand.hbm [shape: f32[2,1,128], index: 2, kind: input, shape index: {}]
  %s3 = inlined_call_operand.hbm [shape: f32[2,16,128], index: 3, kind: output, shape index: {}]
  %s4 = sld [smem:[#allocation0]]
  $region57: #{tpu_custom_call.1} parent=0
    _
  %s6 = ssub.s32 1, %s4
  %s7 = scalar_select 0, %s6, %s4
  $region1: #{tpu_custom_call.1} parent=0
    #allocation2 [shape = 'u8[16384]{0}', space=vmem, size = 0x4000, scoped, tag = 'input window, operand 0']
    #allocation3 [shape = 's32[2]{0}', space=sflag, size = 0x8, scoped, tag = 'scoped memory for tpu_custom_call.1']
    #allocation4 [shape = 's32[2]{0}', space=sflag, size = 0x8, scoped, tag = 'scoped memory for tpu_custom_call.1']
    #allocation5 [shape = 'u8[65536]{0}', space=vmem, size = 0x10000, scoped, tag = 'input window, operand 1']
    #allocation6 [shape = 's32[2]{0}', space=sflag, size = 0x8, scoped, tag = 'scoped memory for tpu_custom_call.1']
    #allocation7 [shape = 'u8[1024]{0}', space=vmem, size = 0x400, scoped, tag = 'input window, operand 2']
    #allocation8 [shape = 'u8[16384]{0}', space=vmem, size = 0x4000, scoped, tag = 'output window, operand 0']
    %8 = vsyncpa [#allocation3], 0
    %s9 = scalar_lea.sflag [#allocation3], 1
    %10 = vsyncpa %s9, 0
    %11 = vsyncpa [#allocation6], 0
    %s12 = scalar_lea.sflag [#allocation6], 1
    %13 = vsyncpa %s12, 0
    %14 = vsyncpa [#allocation4], 0
    %s15 = scalar_lea.sflag [#allocation4], 1
    %16 = vsyncpa %s15, 0
    loop: start=0, step=1, limit=4
    $region2: #{tpu_custom_call.1} parent=1 // loop_pre_header
      _
    $region3: #{tpu_custom_call.1} parent=1 // loop_header
      %s18 = sphi 0, %s22
      %p19 = scmp.ge.s32.totalorder %s18, 4
      %s25 = sphi 0, %s37
      %s26 = sphi 0, %s33
      %s27 = sphi 0, %s25
      %s28 = sphi 0, %s26
      %s29 = sphi 0, %s27
      %s30 = sphi 0, %s28
      %s42 = sphi 0, %s44
      %s45 = sphi 0, %s42
      %s46 = sphi 0, %s45
      %s62 = sphi 0, %s46
      %s68 = sphi 0, %s70
      %s71 = sphi 0, %s68
      %s72 = sphi 0, %s71
      %s88 = sphi 0, %s72
      %s94 = sphi 0, %s96
      %s97 = sphi 0, %s94
      %s98 = sphi 0, %s97
      %s114 = sphi 0, %s98
      %s122 = sphi 0, %s124
      %s125 = sphi 0, %s122
      %s126 = sphi 0, %s125
      %s142 = sphi 0, %s126
    $region4: #{tpu_custom_call.1} parent=1 // loop_header_branch
      %21 = sbr.rel (%p19) target = $region8
    $region5: #{tpu_custom_call.1} parent=1 // loop_body
      %s23 = ssub.s32 %s18, 1
      %s24 = ssub.s32 %s18, 2
      %s31 = sadd.s32 1, %s26
      %p32 = scmp.ge.s32.totalorder %s31, 1
      %s33 = scalar_select %p32, 0, %s31
      %s34 = sadd.s32 1, %s25
      %s35 = scalar_select %p32, %s34, %s25
      %p36 = scmp.ge.s32.totalorder %s35, 2
      %s37 = scalar_select %p36, 0, %s35
      %s38 = ssub.s32 %s25, %s37
      %s39 = ssub.s32 %s26, %s33
      %s40 = sor.u32 %s38, %s39
      %p41 = scmp.eq.s32.totalorder %s40, 0
      %s43 = sadd.s32 %s42, 1
      %s44 = scalar_select %p41, %s42, %s43
      %p47 = pneg %p41
      %p48 = scmp.eq.s32.totalorder %s18, 1
      %p49 = por %p47, %p48
      %p50 = scmp.ne.s32.totalorder %s42, %s45
      %p51 = scmp.eq.s32.totalorder %s18, 0
      %p52 = por %p50, %p51
      %p53 = scmp.ne.s32.totalorder %s42, %s45
      %p54 = scmp.eq.s32.totalorder %s23, 1
      %p55 = por %p53, %p54
      %p56 = scmp.ne.s32.totalorder %s45, %s46
      %p57 = scmp.eq.s32.totalorder %s23, 0
      %p58 = por %p56, %p57
      %p59 = scmp.ne.s32.totalorder %s45, %s46
      %p60 = scmp.eq.s32.totalorder %s24, 1
      %p61 = por %p59, %p60
      %p63 = scmp.ne.s32.totalorder %s46, %s62
      %p64 = scmp.eq.s32.totalorder %s24, 0
      %p65 = por %p63, %p64
      %s66 = ssub.s32 %s25, %s37
      %p67 = scmp.eq.s32.totalorder %s66, 0
      %s69 = sadd.s32 %s68, 1
      %s70 = scalar_select %p67, %s68, %s69
      %p73 = pneg %p67
      %p74 = scmp.eq.s32.totalorder %s18, 1
      %p75 = por %p73, %p74
      %p76 = scmp.ne.s32.totalorder %s68, %s71
      %p77 = scmp.eq.s32.totalorder %s18, 0
      %p78 = por %p76, %p77
      %p79 = scmp.ne.s32.totalorder %s68, %s71
      %p80 = scmp.eq.s32.totalorder %s23, 1
      %p81 = por %p79, %p80
      %p82 = scmp.ne.s32.totalorder %s71, %s72
      %p83 = scmp.eq.s32.totalorder %s23, 0
      %p84 = por %p82, %p83
      %p85 = scmp.ne.s32.totalorder %s71, %s72
      %p86 = scmp.eq.s32.totalorder %s24, 1
      %p87 = por %p85, %p86
      %p89 = scmp.ne.s32.totalorder %s72, %s88
      %p90 = scmp.eq.s32.totalorder %s24, 0
      %p91 = por %p89, %p90
      %s92 = ssub.s32 %s25, %s37
      %p93 = scmp.eq.s32.totalorder %s92, 0
      %s95 = sadd.s32 %s94, 1
      %s96 = scalar_select %p93, %s94, %s95
      %p99 = pneg %p93
      %p100 = scmp.eq.s32.totalorder %s18, 1
      %p101 = por %p99, %p100
      %p102 = scmp.ne.s32.totalorder %s94, %s97
      %p103 = scmp.eq.s32.totalorder %s18, 0
      %p104 = por %p102, %p103
      %p105 = scmp.ne.s32.totalorder %s94, %s97
      %p106 = scmp.eq.s32.totalorder %s23, 1
      %p107 = por %p105, %p106
      %p108 = scmp.ne.s32.totalorder %s97, %s98
      %p109 = scmp.eq.s32.totalorder %s23, 0
      %p110 = por %p108, %p109
      %p111 = scmp.ne.s32.totalorder %s97, %s98
      %p112 = scmp.eq.s32.totalorder %s24, 1
      %p113 = por %p111, %p112
      %p115 = scmp.ne.s32.totalorder %s98, %s114
      %p116 = scmp.eq.s32.totalorder %s24, 0
      %p117 = por %p115, %p116
      %s118 = ssub.s32 %s25, %s37
      %s119 = ssub.s32 %s26, %s33
      %s120 = sor.u32 %s118, %s119
      %p121 = scmp.eq.s32.totalorder %s120, 0
      %s123 = sadd.s32 %s122, 1
      %s124 = scalar_select %p121, %s122, %s123
      %p127 = pneg %p121
      %p128 = scmp.eq.s32.totalorder %s18, 1
      %p129 = por %p127, %p128
      %p130 = scmp.ne.s32.totalorder %s122, %s125
      %p131 = scmp.eq.s32.totalorder %s18, 0
      %p132 = por %p130, %p131
      %p133 = scmp.ne.s32.totalorder %s122, %s125
      %p134 = scmp.eq.s32.totalorder %s23, 1
      %p135 = por %p133, %p134
      %p136 = scmp.ne.s32.totalorder %s125, %s126
      %p137 = scmp.eq.s32.totalorder %s23, 0
      %p138 = por %p136, %p137
      %p139 = scmp.ne.s32.totalorder %s125, %s126
      %p140 = scmp.eq.s32.totalorder %s24, 1
      %p141 = por %p139, %p140
      %p143 = scmp.ne.s32.totalorder %s126, %s142
      %p144 = scmp.eq.s32.totalorder %s24, 0
      %p145 = por %p143, %p144
      %p146 = scmp.le.s32.totalorder 1, %s18
      %p147 = scmp.lt.s32.totalorder %s18, 3
      %p148 = pnand %p146, %p147
      %p149 = pneg %p148
      // Predicated region
      $region9: #{tpu_custom_call.1} parent=5 // pred_check
        _
      $region10: #{tpu_custom_call.1} parent=5 // pred_check_branch
        %151 = sbr.rel (%p148) target = $region12
      $region11: #{tpu_custom_call.1} parent=5 // pred_region
        %s152 = ssub.s32 %s18, 1
      $region12: #{tpu_custom_call.1} parent=5 // pred_fallthru
        _
      %p153 = scmp.lt.s32.totalorder %s18, 2
      // Predicated region
      $region13: #{tpu_custom_call.1} parent=5 // pred_check
        %p154 = pneg %p153
      $region14: #{tpu_custom_call.1} parent=5 // pred_check_branch
        %156 = sbr.rel (%p154) target = $region16
      $region15: #{tpu_custom_call.1} parent=5 // pred_region
        // Predicated region
        $region17: #{tpu_custom_call.1} parent=15 // pred_check
          %p157 = pneg %p52
        $region18: #{tpu_custom_call.1} parent=15 // pred_check_branch
          %159 = sbr.rel (%p157) target = $region20
        $region19: #{tpu_custom_call.1} parent=15 // pred_region
          %s160 = sand.u32 %s42, 1
          %s161 = scalar_lea.sflag [#allocation3], %s160
          %s162 = sand.u32 %s42, 1
          %s163 = smul.addr %s162, 16
          %s164 = scalar_lea.vmem [#allocation2], %s163
          %s165 = smul.u32 2, %s26
          %167 = vsyncadd %s161, 0
          %s168 = smul.addr %s25, 2
          %s169 = sadd.s32 %s165, %s168
          %s170 = smul.addr %s169, 8
          %s171 = scalar_lea.hbm %s0, %s170
          %s172 = sshll.u32 %s171, 4
          %s173 = int_to_ptr.hbm [resolvable:$true] %s172
          %s174 = sshll.u32 %s164, 4
          %s175 = int_to_ptr.vmem [resolvable:$true] %s174
          %180 = dma.hbm_to_vmem [thread:$0]  %s173, 256, %s175, %s161, 128, 128, 8
        $region20: #{tpu_custom_call.1} parent=15 // pred_fallthru
          _
        // Predicated region
        $region21: #{tpu_custom_call.1} parent=15 // pred_check
          %p181 = pneg %p78
        $region22: #{tpu_custom_call.1} parent=15 // pred_check_branch
          %183 = sbr.rel (%p181) target = $region24
        $region23: #{tpu_custom_call.1} parent=15 // pred_region
          %s184 = sand.u32 %s18, 1
          %s185 = scalar_lea.sflag [#allocation6], %s184
          %s186 = sand.u32 %s68, 1
          %s187 = smul.addr %s186, 64
          %s188 = scalar_lea.vmem [#allocation5], %s187
          %190 = vsyncadd %s185, 0
          %s191 = smul.addr %s25, 16
          %s192 = smul.addr %s191, 4
          %s193 = scalar_lea.hbm %s1, %s192
          %s194 = sshll.u32 %s193, 4
          %s195 = int_to_ptr.hbm [resolvable:$true] %s194
          %s196 = sshll.u32 %s188, 4
          %s197 = int_to_ptr.vmem [resolvable:$true] %s196
          %202 = dma.hbm_to_vmem [thread:$0]  %s195, 1024, %s197, %s185, 64, 64, 4
        $region24: #{tpu_custom_call.1} parent=15 // pred_fallthru
          _
        // Predicated region
        $region25: #{tpu_custom_call.1} parent=15 // pred_check
          %p203 = pneg %p104
        $region26: #{tpu_custom_call.1} parent=15 // pred_check_branch
          %205 = sbr.rel (%p203) target = $region28
        $region27: #{tpu_custom_call.1} parent=15 // pred_region
          %s206 = sand.u32 %s18, 1
          %s207 = scalar_lea.sflag [#allocation6], %s206
          %s208 = sand.u32 %s94, 1
          %s209 = scalar_lea.vmem [#allocation7], %s208
          %211 = vsyncadd %s207, 0
          %s212 = scalar_lea.hbm %s2, %s25
          %s214 = sshll.u32 %s212, 4
          %s215 = int_to_ptr.hbm [resolvable:$true] %s214
          %s216 = sshll.u32 %s209, 4
          %s217 = int_to_ptr.vmem [resolvable:$true] %s216
          %219 = dma.hbm_to_vmem [thread:$0]  %s215, 16, %s217, %s207
        $region28: #{tpu_custom_call.1} parent=15 // pred_fallthru
          _
      $region16: #{tpu_custom_call.1} parent=5 // pred_fallthru
        _
      %p220 = scmp.le.s32.totalorder 1, %s18
      %p221 = scmp.lt.s32.totalorder %s18, 3
      %p222 = pnand %p220, %p221
      %p223 = pneg %p222
      // Predicated region
      $region29: #{tpu_custom_call.1} parent=5 // pred_check
        _
      $region30: #{tpu_custom_call.1} parent=5 // pred_check_branch
        %225 = sbr.rel (%p222) target = $region32
      $region31: #{tpu_custom_call.1} parent=5 // pred_region
        %s226 = ssub.s32 %s18, 1
        %s227 = sand.u32 %s45, 1
        %s228 = scalar_lea.sflag [#allocation3], %s227
        %s229 = sand.u32 %s45, 1
        %s230 = smul.addr %s229, 16
        %s231 = scalar_lea.vmem [#allocation2], %s230
        // Predicated region
        $region33: #{tpu_custom_call.1} parent=31 // pred_check
          %p232 = pneg %p58
        $region34: #{tpu_custom_call.1} parent=31 // pred_check_branch
          %234 = sbr.rel (%p232) target = $region36
        $region35: #{tpu_custom_call.1} parent=31 // pred_region
          %236 = dma.done %s228, 256
        $region36: #{tpu_custom_call.1} parent=31 // pred_fallthru
          _
        %s237 = sand.u32 %s23, 1
        %s238 = scalar_lea.sflag [#allocation6], %s237
        %s239 = sand.u32 %s71, 1
        %s240 = smul.addr %s239, 64
        %s241 = scalar_lea.vmem [#allocation5], %s240
        // Predicated region
        $region37: #{tpu_custom_call.1} parent=31 // pred_check
          %p242 = pneg %p84
        $region38: #{tpu_custom_call.1} parent=31 // pred_check_branch
          %244 = sbr.rel (%p242) target = $region40
        $region39: #{tpu_custom_call.1} parent=31 // pred_region
          %246 = dma.done %s238, 1024
        $region40: #{tpu_custom_call.1} parent=31 // pred_fallthru
          _
        %s247 = sand.u32 %s23, 1
        %s248 = scalar_lea.sflag [#allocation6], %s247
        %s249 = sand.u32 %s97, 1
        %s250 = scalar_lea.vmem [#allocation7], %s249
        // Predicated region
        $region41: #{tpu_custom_call.1} parent=31 // pred_check
          %p251 = pneg %p110
        $region42: #{tpu_custom_call.1} parent=31 // pred_check_branch
          %253 = sbr.rel (%p251) target = $region44
        $region43: #{tpu_custom_call.1} parent=31 // pred_region
          %255 = dma.done %s248, 16
        $region44: #{tpu_custom_call.1} parent=31 // pred_fallthru
          _
        %s256 = sand.u32 %s45, 1
        %s257 = scalar_lea.sflag [#allocation3], %s256
        %s258 = sand.u32 %s45, 1
        %s259 = smul.addr %s258, 16
        %s260 = scalar_lea.vmem [#allocation2], %s259
        %p261 = pneg %p58
        %p262 = pneg %p55
        %s263 = sand.u32 %s23, 1
        %s264 = scalar_lea.sflag [#allocation6], %s263
        %s265 = sand.u32 %s71, 1
        %s266 = smul.addr %s265, 64
        %s267 = scalar_lea.vmem [#allocation5], %s266
        %p268 = pneg %p84
        %p269 = pneg %p81
        %s270 = sand.u32 %s23, 1
        %s271 = scalar_lea.sflag [#allocation6], %s270
        %s272 = sand.u32 %s97, 1
        %s273 = scalar_lea.vmem [#allocation7], %s272
        %p274 = pneg %p110
        %p275 = pneg %p107
        %p276 = pneg %p138
        %p277 = pneg %p135
        %s278 = sand.u32 %s125, 1
        %s279 = scalar_lea.sflag [#allocation4], %s278
        %s280 = sand.u32 %s125, 1
        %s281 = smul.addr %s280, 16
        %s282 = scalar_lea.vmem [#allocation8], %s281
        %s283 = smul.u32 2, %s28
        %s284 = smul.u32 2, %s28
        %v285 = vld [vmem:[%s231] sm:$0xff]
        %v286 = vld [vmem:[%s231 + $0x8] sm:$0xff]
        %v287 = vpack.c.bf16 %v286, %v285
        %v288 = vld [vmem:[%s241] sm:$0xf]
        %v289 = vld [vmem:[%s241 + $0x4] sm:$0xf]
        %v290 = vld [vmem:[%s241 + $0x8] sm:$0xf]
        %v291 = vld [vmem:[%s241 + $0xc] sm:$0xf]
        %v292 = vld [vmem:[%s241 + $0x10] sm:$0xf]
        %v293 = vld [vmem:[%s241 + $0x14] sm:$0xf]
        %v294 = vld [vmem:[%s241 + $0x18] sm:$0xf]
        %v295 = vld [vmem:[%s241 + $0x1c] sm:$0xf]
        %v296 = vld [vmem:[%s241 + $0x20] sm:$0xf]
        %v297 = vld [vmem:[%s241 + $0x24] sm:$0xf]
        %v298 = vld [vmem:[%s241 + $0x28] sm:$0xf]
        %v299 = vld [vmem:[%s241 + $0x2c] sm:$0xf]
        %v300 = vld [vmem:[%s241 + $0x30] sm:$0xf]
        %v301 = vld [vmem:[%s241 + $0x34] sm:$0xf]
        %v302 = vld [vmem:[%s241 + $0x38] sm:$0xf]
        %v303 = vld [vmem:[%s241 + $0x3c] sm:$0xf]
        %v304 = vld [vmem:[%s250] sm:$0x1]
        %v306 = vperm.slane %v304, 0
        %v324 = vunpack.c.l.b16 %v288
        %v325 = vunpack.c.l.b16 %v289
        %v326 = vunpack.c.l.b16 %v290
        %v327 = vunpack.c.l.b16 %v291
        %v328 = vunpack.c.l.b16 %v292
        %v329 = vunpack.c.l.b16 %v293
        %v330 = vunpack.c.l.b16 %v294
        %v331 = vunpack.c.l.b16 %v295
        %v332 = vunpack.c.l.b16 %v296
        %v333 = vunpack.c.l.b16 %v297
        %v334 = vunpack.c.l.b16 %v298
        %v335 = vunpack.c.l.b16 %v299
        %v336 = vunpack.c.l.b16 %v300
        %v337 = vunpack.c.l.b16 %v301
        %v338 = vunpack.c.l.b16 %v302
        %v339 = vunpack.c.l.b16 %v303
        %v340 = vpack.c.b16 %v325, %v324
        %v341 = vpack.c.b16 %v327, %v326
        %v342 = vpack.c.b16 %v329, %v328
        %v343 = vpack.c.b16 %v331, %v330
        %v344 = vpack.c.b16 %v333, %v332
        %v345 = vpack.c.b16 %v335, %v334
        %v346 = vpack.c.b16 %v337, %v336
        %v347 = vpack.c.b16 %v339, %v338
        %356 = vmatpush.bf16.xpose.msra.mxu0 %v347
        %357 = vmatpush.bf16.xpose.msra.mxu0 %v346
        %358 = vmatpush.bf16.xpose.msra.mxu0 %v345
        %359 = vmatpush.bf16.xpose.msra.mxu0 %v344
        %360 = vmatpush.bf16.xpose.msra.mxu0 %v343
        %361 = vmatpush.bf16.xpose.msra.mxu0 %v342
        %362 = vmatpush.bf16.xpose.msra.mxu0 %v341
        %363 = vmatpush.bf16.xpose.msra.mxu0 %v340
        %364 = vmatmul.bf16.gmra.mxu0 %v287
        %v365 = vpop.f32.mrf.mxu0
        %v366 = vadd.f32 %v306, %v365
        %v367 = vpop.f32.mrf.mxu0
        %v368 = vadd.f32 %v306, %v367
        %369 = vdwg.mxu0
        %370 = vmax.xlane.f32.xlu0 %v366
        %v371 = vpop.xlane.xlu0 %370
        %372 = vmax.xlane.f32.xlu0 %v368
        %v373 = vpop.xlane.xlu0 %372
        %v374 = vsub.f32 %v366, %v371
        %v375 = vsub.f32 %v368, %v373
        %v376 = vmul.f32 %v374, 1.442695
        %v377 = vpow.pop %v376
        %v378 = vmul.f32 %v375, 1.442695
        %v379 = vpow.pop %v378
        %380 = vadd.xlane.f32.xlu0 %v377
        %v381 = vpop.xlane.xlu0 %380
        %382 = vadd.xlane.f32.xlu0 %v379
        %v383 = vpop.xlane.xlu0 %382
        %v384 = vpack.c.bf16 %v379, %v377
        %385 = vmatpush.bf16.msra.mxu0 %v347
        %386 = vmatpush.bf16.msra.mxu0 %v346
        %387 = vmatpush.bf16.msra.mxu0 %v345
        %388 = vmatpush.bf16.msra.mxu0 %v344
        %389 = vmatpush.bf16.msra.mxu0 %v343
        %390 = vmatpush.bf16.msra.mxu0 %v342
        %391 = vmatpush.bf16.msra.mxu0 %v341
        %392 = vmatpush.bf16.msra.mxu0 %v340
        %393 = vmatmul.bf16.gmra.mxu0 %v384
        %v394 = vpop.f32.mrf.mxu0
        %v395 = vadd.f32 0.0, %v394
        %v396 = vpop.f32.mrf.mxu0
        %v397 = vadd.f32 0.0, %v396
        %398 = vdwg.mxu0
        %v399 = vrcp.pop %v381
        %v400 = vrcp.pop %v383
        %v401 = vmul.f32 %v395, %v399
        %v402 = vmul.f32 %v397, %v400
        %403 = vst [vmem:[%s282] sm:$0xff] %v401
        %404 = vst [vmem:[%s282 + $0x8] sm:$0xff] %v402
        %s405 = sand.u32 %s125, 1
        %s406 = scalar_lea.sflag [#allocation4], %s405
        %s407 = sand.u32 %s125, 1
        %s408 = smul.addr %s407, 16
        %s409 = scalar_lea.vmem [#allocation8], %s408
        // Predicated region
        $region45: #{tpu_custom_call.1} parent=31 // pred_check
          %p410 = pneg %p135
        $region46: #{tpu_custom_call.1} parent=31 // pred_check_branch
          %412 = sbr.rel (%p410) target = $region48
        $region47: #{tpu_custom_call.1} parent=31 // pred_region
          %s413 = smul.u32 2, %s28
          %415 = vsyncadd %s406, 0
          %s416 = smul.addr %s27, 2
          %s417 = sadd.s32 %s413, %s416
          %s418 = smul.addr %s417, 8
          %s419 = scalar_lea.hbm %s3, %s418
          %s420 = sshll.u32 %s409, 4
          %s421 = int_to_ptr.vmem [resolvable:$true] %s420
          %s422 = sshll.u32 %s419, 4
          %s423 = int_to_ptr.hbm [resolvable:$true] %s422
          %428 = dma.vmem_to_hbm [thread:$0]  %s421, 256, %s423, %s406, 128, 128, 8
        $region48: #{tpu_custom_call.1} parent=31 // pred_fallthru
          _
      $region32: #{tpu_custom_call.1} parent=5 // pred_fallthru
        _
      %p429 = scmp.le.s32.totalorder 2, %s18
      // Predicated region
      $region49: #{tpu_custom_call.1} parent=5 // pred_check
        %p430 = pneg %p429
      $region50: #{tpu_custom_call.1} parent=5 // pred_check_branch
        %432 = sbr.rel (%p430) target = $region52
      $region51: #{tpu_custom_call.1} parent=5 // pred_region
        %s433 = ssub.s32 %s18, 2
        // Predicated region
        $region53: #{tpu_custom_call.1} parent=51 // pred_check
          %p434 = pneg %p141
        $region54: #{tpu_custom_call.1} parent=51 // pred_check_branch
          %436 = sbr.rel (%p434) target = $region56
        $region55: #{tpu_custom_call.1} parent=51 // pred_region
          %s437 = sand.u32 %s126, 1
          %s438 = scalar_lea.sflag [#allocation4], %s437
          %s439 = sand.u32 %s126, 1
          %s440 = smul.addr %s439, 16
          %s441 = scalar_lea.vmem [#allocation8], %s440
          %443 = dma.done %s438, 256
        $region56: #{tpu_custom_call.1} parent=51 // pred_fallthru
          _
      $region52: #{tpu_custom_call.1} parent=5 // pred_fallthru
        _
    $region6: #{tpu_custom_call.1} parent=1 // loop_footer
      %s22 = sadd.s32 1, %s18
    $region7: #{tpu_custom_call.1} parent=1 // loop_footer_branch
      %17 = sbr.rel target = $region3
    $region8: #{tpu_custom_call.1} parent=1 // loop_exit
      _
    %444 = vsyncpa [#allocation3], 1
    %s445 = scalar_lea.sflag [#allocation3], 1
    %446 = vsyncpa %s445, 1
    %447 = vsyncpa [#allocation6], 1
    %s448 = scalar_lea.sflag [#allocation6], 1
    %449 = vsyncpa %s448, 1
    %450 = vsyncpa [#allocation4], 1
    %s451 = scalar_lea.sflag [#allocation4], 1
    %452 = vsyncpa %s451, 1

</llo_original>
